<compile_context>
chip_gen: v5e
topology: v5e:2x2
jax: 0.10.0
libtpu: 0.0.40
codegen_flags: <defaults>
</compile_context>

<pallas_src>
import functools

import jax
import jax.numpy as jnp
from jax import lax
from jax.experimental import pallas as pl
from jax.experimental.pallas import tpu as pltpu

_NEG_BIG = -1e30          # finite "-inf" so masked padding rows never make NaNs
_F32_TEMPS = 3            # assumed live f32 element-wise temporaries per block


def _circle_loss_kernel(pos_ref, neg_ref, out_ref,
                        mp_ref, lp_ref, mn_ref, ln_ref,
                        *, m, gamma, P, N, TP, TN, mask_p, mask_n):
    """Grid = (batch tiles [parallel], row tiles [arbitrary reduction])."""
    r = pl.program_id(1)

    @pl.when(r == 0)
    def _init():
        mp_ref[...] = jnp.full(mp_ref.shape, _NEG_BIG, jnp.float32)
        lp_ref[...] = jnp.zeros(lp_ref.shape, jnp.float32)
        mn_ref[...] = jnp.full(mn_ref.shape, _NEG_BIG, jnp.float32)
        ln_ref[...] = jnp.zeros(ln_ref.shape, jnp.float32)

    p = pos_ref[...].astype(jnp.float32)          # (TP, TB)
    n = neg_ref[...].astype(jnp.float32)          # (TN, TB)

    # .detach() only affects the backward pass; forward math is identical.
    ap = jnp.maximum(-p + (1.0 + m), 0.0)
    an = jnp.maximum(n + m, 0.0)
    logit_p = (-gamma) * ap * (p - (1.0 - m))     # (TP, TB)
    logit_n = gamma * an * (n - m)                # (TN, TB)

    if mask_p:   # static flag: only emitted when the positives rows are padded
        row = r * TP + lax.broadcasted_iota(jnp.int32, logit_p.shape, 0)
        logit_p = jnp.where(row < P, logit_p, _NEG_BIG)
    if mask_n:
        row = r * TN + lax.broadcasted_iota(jnp.int32, logit_n.shape, 0)
        logit_n = jnp.where(row < N, logit_n, _NEG_BIG)

    def _online_lse(logit, m_acc, l_acc):
        # streaming logsumexp over the row (pairs) axis
        tile_max = jnp.max(logit, axis=0, keepdims=True)          # (1, TB)
        m_new = jnp.maximum(m_acc[...], tile_max)
        alpha = jnp.exp(m_acc[...] - m_new)
        l_acc[...] = alpha * l_acc[...] + jnp.sum(
            jnp.exp(logit - m_new), axis=0, keepdims=True)
        m_acc[...] = m_new

    _online_lse(logit_p, mp_ref, lp_ref)
    _online_lse(logit_n, mn_ref, ln_ref)

    @pl.when(r == pl.num_programs(1) - 1)
    def _finalize():
        # lse(logit_p) + lse(logit_n), fused into a single log.
        s = mp_ref[...] + mn_ref[...] + jnp.log(lp_ref[...] * ln_ref[...])
        # numerically stable softplus
        out_ref[...] = jnp.maximum(s, 0.0) + jnp.log1p(jnp.exp(-jnp.abs(s)))


def _round_up(x, mult):
    return ((x + mult - 1) // mult) * mult


def _vmem_estimate(tp, tn, tb, itemsize):
    """Double-buffered input blocks + ~3 live f32 temporaries + out/scratch."""
    rows = tp + tn
    return rows * tb * (2 * itemsize + 4 * _F32_TEMPS) + 8 * tb * 4


def _plan_tiles(P, N, B, itemsize, target_step_bytes, vmem_budget_bytes):
    """Pick (TB, R, TP, TN): lane tile, #row-reduction steps, per-step row tiles."""
    rows = P + N
    b128 = _round_up(B, 128)
    bytes_per_lane = max(rows * itemsize, 1)

    # Lane tile from the per-grid-step HBM byte target (real dtype itemsize).
    tb = _round_up(max(1, -(-target_step_bytes // bytes_per_lane)), 128)
    # Never DMA/compute more padded lanes than necessary.
    tb = min(tb, b128)
    # Keep >= 2 batch tiles when possible so both v7x TensorCores stay busy.
    if b128 >= 256:
        tb = min(tb, max(128, (b128 // 256) * 128))
    # Lane tile must leave room for at least a ~16-row block in the VMEM budget.
    per_lane_cost = min(rows, 16) * (2 * itemsize + 4 * _F32_TEMPS)
    tb_cap = max(128, (vmem_budget_bytes // per_lane_cost // 128) * 128)
    tb = max(128, min(tb, tb_cap))

    # Common case: whole P and N per block.
    if _vmem_estimate(P, N, tb, itemsize) <= vmem_budget_bytes:
        return tb, 1, P, N

    # Large P+N: split rows across a trailing reduction axis (online logsumexp).
    row_cap = max(vmem_budget_bytes // (tb * (2 * itemsize + 4 * _F32_TEMPS)), 16)
    r = max(2, -(-rows // row_cap))
    while True:
        tp = _round_up(-(-P // r), 8)
        tn = _round_up(-(-N // r), 8)
        if _vmem_estimate(tp, tn, tb, itemsize) <= vmem_budget_bytes or r >= rows:
            return tb, r, tp, tn
        r += 1


def circle_loss_using_scores(positives, negatives, *, m: float = 0.1,
                             gamma: float = 1.0, cast_scores_to=None,
                             target_step_bytes: int = 8 * 1024 * 1024,
                             vmem_budget_bytes: int = 28 * 1024 * 1024):
    """Pallas TPU implementation of CircleLossUsingScores.forward."""
    squeeze = positives.ndim == 1
    if squeeze:
        positives = positives[:, None]
        negatives = negatives[:, None]
    if cast_scores_to is not None:
        # Memory-bound kernel: bf16 scores halve HBM traffic; math stays f32.
        positives = positives.astype(cast_scores_to)
        negatives = negatives.astype(cast_scores_to)

    P, B = positives.shape
    N, B2 = negatives.shape
    assert B == B2, "positives/negatives must share the trailing (batch) axis"
    assert P >= 1 and N >= 1, "empty positives/negatives give -inf logsumexp"

    itemsize = max(jnp.dtype(positives.dtype).itemsize,
                   jnp.dtype(negatives.dtype).itemsize)
    TB, R, TP, TN = _plan_tiles(P, N, B, itemsize,
                                target_step_bytes, vmem_budget_bytes)

    num_b = -(-B // TB)
    b_pad, p_pad, n_pad = num_b * TB, R * TP, R * TN
    if b_pad != B or p_pad != P:
        # Zero padding is finite/harmless; padded rows are masked in-kernel and
        # padded batch lanes are sliced off below.
        positives = jnp.pad(positives, ((0, p_pad - P), (0, b_pad - B)))
    if b_pad != B or n_pad != N:
        negatives = jnp.pad(negatives, ((0, n_pad - N), (0, b_pad - B)))

    kernel = functools.partial(
        _circle_loss_kernel, m=float(m), gamma=float(gamma),
        P=P, N=N, TP=TP, TN=TN, mask_p=(p_pad != P), mask_n=(n_pad != N))

    # Explicit scoped-VMEM limit covering the double-buffered blocks + headroom.
    vmem_limit = max(16 * 1024 * 1024,
                     int(_vmem_estimate(TP, TN, TB, itemsize) * 1.2) + (2 << 20))

    cost = pl.CostEstimate(
        flops=8 * (P + N) * B,
        transcendentals=(P + N + 4) * B,
        bytes_accessed=(P + N) * B * itemsize + 4 * B,
    )

    out = pl.pallas_call(
        kernel,
        out_shape=jax.ShapeDtypeStruct((1, b_pad), jnp.float32),
        grid=(num_b, R),
        in_specs=[
            pl.BlockSpec((TP, TB), lambda i, r: (r, i)),
            pl.BlockSpec((TN, TB), lambda i, r: (r, i)),
        ],
        out_specs=pl.BlockSpec((1, TB), lambda i, r: (0, i)),
        scratch_shapes=[pltpu.VMEM((1, TB), jnp.float32)] * 4,
        compiler_params=pltpu.CompilerParams(
            dimension_semantics=("parallel", "arbitrary"),
            vmem_limit_bytes=int(vmem_limit),
        ),
        cost_estimate=cost,
    )(positives, negatives)

    loss = out[0, :B]
    return loss[0] if squeeze else loss


def _reference(positives, negatives, m=0.1, gamma=1.0):
    positives = positives.astype(jnp.float32)
    negatives = negatives.astype(jnp.float32)
    ap = jnp.maximum(-positives + 1.0 + m, 0.0)
    an = jnp.maximum(negatives + m, 0.0)
    logit_p = -ap * (positives - (1.0 - m)) * gamma
    logit_n = an * (negatives - m) * gamma
    s = (jax.scipy.special.logsumexp(logit_n, axis=0)
         + jax.scipy.special.logsumexp(logit_p, axis=0))
    return jax.nn.softplus(s)


if __name__ == "__main__":
    key = jax.random.PRNGKey(0)
    kp, kn, kp2, kn2 = jax.random.split(key, 4)

    # Small shapes consistent with the module: P positive / N negative scores
    # per batch column.
    P, N, B = 16, 32, 8
    positives = jax.random.uniform(kp, (P, B), jnp.float32, minval=-1.0, maxval=1.0)
    negatives = jax.random.uniform(kn, (N, B), jnp.float32, minval=-1.0, maxval=1.0)
    ref = _reference(positives, negatives)

    # 1) Default path: whole P/N rows per block, single reduction step.
    loss = circle_loss_using_scores(positives, negatives, m=0.1, gamma=1.0)
    jax.block_until_ready(loss)
    assert loss.shape == (B,)
    assert jnp.allclose(loss, ref, atol=1e-5, rtol=1e-5), (loss, ref)

    # 2) Force the online-logsumexp reduction path (large P+N fallback) by
    #    shrinking the VMEM budget.
    loss_split = circle_loss_using_scores(positives, negatives, m=0.1, gamma=1.0,
                                          vmem_budget_bytes=48 * 1024)
    jax.block_until_ready(loss_split)
    assert jnp.allclose(loss_split, ref, atol=1e-5, rtol=1e-5), (loss_split, ref)

    # 3) 1-D inputs (torch allows them; reduction over dim=0 -> scalar loss).
    loss_1d = circle_loss_using_scores(positives[:, 0], negatives[:, 0],
                                       m=0.1, gamma=1.0)
    jax.block_until_ready(loss_1d)
    assert loss_1d.shape == ()
    assert jnp.allclose(loss_1d, ref[0], atol=1e-5, rtol=1e-5), (loss_1d, ref[0])

    # 4) Non-multiple-of-128 batch, >=2 lane tiles, bf16 scores (f32 math in-kernel).
    P2, N2, B2 = 8, 24, 200
    pos2 = jax.random.uniform(kp2, (P2, B2), jnp.float32, minval=-1.0, maxval=1.0)
    neg2 = jax.random.uniform(kn2, (N2, B2), jnp.float32, minval=-1.0, maxval=1.0)
    pos2_bf = pos2.astype(jnp.bfloat16)
    neg2_bf = neg2.astype(jnp.bfloat16)
    loss2 = circle_loss_using_scores(pos2_bf, neg2_bf, m=0.1, gamma=1.0)
    jax.block_until_ready(loss2)
    ref2 = _reference(pos2_bf.astype(jnp.float32), neg2_bf.astype(jnp.float32))
    assert loss2.shape == (B2,)
    assert jnp.allclose(loss2, ref2, atol=1e-5, rtol=1e-5), (loss2, ref2)

    print("KERNEL_OK")
</pallas_src>

<mosaic_0001>
module attributes {stable_mosaic.version = 11 : i64} {
  func.func @_circle_loss_kernel(%arg0: i32, %arg1: i32, %arg2: memref<16x128xf32, #tpu.memory_space<vmem>>, %arg3: memref<32x128xf32, #tpu.memory_space<vmem>>, %arg4: memref<1x128xf32, #tpu.memory_space<vmem>>, %arg5: memref<1x128xf32, #tpu.memory_space<vmem>>, %arg6: memref<1x128xf32, #tpu.memory_space<vmem>>, %arg7: memref<1x128xf32, #tpu.memory_space<vmem>>, %arg8: memref<1x128xf32, #tpu.memory_space<vmem>>) attributes {dimension_semantics = [#tpu.dimension_semantics<parallel>, #tpu.dimension_semantics<arbitrary>], iteration_bounds = array<i64: 1, 1>, scalar_prefetch = 0 : i64, scratch_operands = 4 : i64, tpu.core_type = #tpu.core_type<tc>, window_params = [{transform_indices = @transform_0, window_bounds = array<i64: 16, 128>}, {transform_indices = @transform_1, window_bounds = array<i64: 32, 128>}, {transform_indices = @transform_2, window_bounds = array<i64: 1, 128>}]} {
    %c0_i32 = arith.constant 0 : i32
    %0 = arith.cmpi eq, %arg1, %c0_i32 : i32
    %1 = arith.extui %0 : i1 to i32
    %c0_i32_0 = arith.constant 0 : i32
    %2 = arith.cmpi ne, %1, %c0_i32_0 : i32
    scf.if %2 {
      %cst_38 = arith.constant -1.000000e+30 : f32
      %62 = vector.broadcast %cst_38 : f32 to vector<1x128xf32>
      %c0_39 = arith.constant 0 : index
      %c0_40 = arith.constant 0 : index
      %63 = vector.load %arg5[%c0_39, %c0_40] : memref<1x128xf32, #tpu.memory_space<vmem>>, vector<1x128xf32>
      tpu.vector_store %arg5[%c0_39, %c0_40], %62 {strides = array<i32>} : memref<1x128xf32, #tpu.memory_space<vmem>>, vector<1x128xf32>,
      %cst_41 = arith.constant 0.000000e+00 : f32
      %64 = vector.broadcast %cst_41 : f32 to vector<1x128xf32>
      %c0_42 = arith.constant 0 : index
      %c0_43 = arith.constant 0 : index
      %65 = vector.load %arg6[%c0_42, %c0_43] : memref<1x128xf32, #tpu.memory_space<vmem>>, vector<1x128xf32>
      tpu.vector_store %arg6[%c0_42, %c0_43], %64 {strides = array<i32>} : memref<1x128xf32, #tpu.memory_space<vmem>>, vector<1x128xf32>,
      %cst_44 = arith.constant -1.000000e+30 : f32
      %66 = vector.broadcast %cst_44 : f32 to vector<1x128xf32>
      %c0_45 = arith.constant 0 : index
      %c0_46 = arith.constant 0 : index
      %67 = vector.load %arg7[%c0_45, %c0_46] : memref<1x128xf32, #tpu.memory_space<vmem>>, vector<1x128xf32>
      tpu.vector_store %arg7[%c0_45, %c0_46], %66 {strides = array<i32>} : memref<1x128xf32, #tpu.memory_space<vmem>>, vector<1x128xf32>,
      %cst_47 = arith.constant 0.000000e+00 : f32
      %68 = vector.broadcast %cst_47 : f32 to vector<1x128xf32>
      %c0_48 = arith.constant 0 : index
      %c0_49 = arith.constant 0 : index
      %69 = vector.load %arg8[%c0_48, %c0_49] : memref<1x128xf32, #tpu.memory_space<vmem>>, vector<1x128xf32>
      tpu.vector_store %arg8[%c0_48, %c0_49], %68 {strides = array<i32>} : memref<1x128xf32, #tpu.memory_space<vmem>>, vector<1x128xf32>,
    } else {
    }
    %c0 = arith.constant 0 : index
    %c0_1 = arith.constant 0 : index
    %3 = vector.load %arg2[%c0, %c0_1] : memref<16x128xf32, #tpu.memory_space<vmem>>, vector<16x128xf32>
    %c0_2 = arith.constant 0 : index
    %c0_3 = arith.constant 0 : index
    %4 = vector.load %arg3[%c0_2, %c0_3] : memref<32x128xf32, #tpu.memory_space<vmem>>, vector<32x128xf32>
    %cst = arith.constant 0.000000e+00 : f32
    %5 = vector.broadcast %cst : f32 to vector<16x128xf32>
    %6 = arith.subf %5, %3 : vector<16x128xf32>
    %cst_4 = arith.constant 1.100000e+00 : f32
    %7 = vector.broadcast %cst_4 : f32 to vector<16x128xf32>
    %8 = arith.addf %6, %7 : vector<16x128xf32>
    %cst_5 = arith.constant 0.000000e+00 : f32
    %9 = vector.broadcast %cst_5 : f32 to vector<16x128xf32>
    %10 = arith.maximumf %8, %9 : vector<16x128xf32>
    %cst_6 = arith.constant 1.000000e-01 : f32
    %11 = vector.broadcast %cst_6 : f32 to vector<32x128xf32>
    %12 = arith.addf %4, %11 : vector<32x128xf32>
    %cst_7 = arith.constant 0.000000e+00 : f32
    %13 = vector.broadcast %cst_7 : f32 to vector<32x128xf32>
    %14 = arith.maximumf %12, %13 : vector<32x128xf32>
    %cst_8 = arith.constant -1.000000e+00 : f32
    %15 = vector.broadcast %cst_8 : f32 to vector<16x128xf32>
    %16 = arith.mulf %15, %10 : vector<16x128xf32>
    %cst_9 = arith.constant 0.899999976 : f32
    %17 = vector.broadcast %cst_9 : f32 to vector<16x128xf32>
    %18 = arith.subf %3, %17 : vector<16x128xf32>
    %19 = arith.mulf %16, %18 : vector<16x128xf32>
    %cst_10 = arith.constant 1.000000e+00 : f32
    %20 = vector.broadcast %cst_10 : f32 to vector<32x128xf32>
    %21 = arith.mulf %20, %14 : vector<32x128xf32>
    %cst_11 = arith.constant 1.000000e-01 : f32
    %22 = vector.broadcast %cst_11 : f32 to vector<32x128xf32>
    %23 = arith.subf %4, %22 : vector<32x128xf32>
    %24 = arith.mulf %21, %23 : vector<32x128xf32>
    %cst_12 = arith.constant dense<0xFF800000> : vector<128xf32>
    %25 = vector.multi_reduction <maximumf>, %19, %cst_12 [0] : vector<16x128xf32> to vector<128xf32>
    %26 = vector.shape_cast %25 : vector<128xf32> to vector<1x128xf32>
    %c0_13 = arith.constant 0 : index
    %c0_14 = arith.constant 0 : index
    %27 = vector.load %arg5[%c0_13, %c0_14] : memref<1x128xf32, #tpu.memory_space<vmem>>, vector<1x128xf32>
    %28 = arith.maximumf %27, %26 : vector<1x128xf32>
    %c0_15 = arith.constant 0 : index
    %c0_16 = arith.constant 0 : index
    %29 = vector.load %arg5[%c0_15, %c0_16] : memref<1x128xf32, #tpu.memory_space<vmem>>, vector<1x128xf32>
    %30 = arith.subf %29, %28 : vector<1x128xf32>
    %31 = math.exp %30 : vector<1x128xf32>
    %c0_17 = arith.constant 0 : index
    %c0_18 = arith.constant 0 : index
    %32 = vector.load %arg6[%c0_17, %c0_18] : memref<1x128xf32, #tpu.memory_space<vmem>>, vector<1x128xf32>
    %33 = arith.mulf %31, %32 : vector<1x128xf32>
    %34 = vector.broadcast %28 : vector<1x128xf32> to vector<16x128xf32>
    %35 = arith.subf %19, %34 : vector<16x128xf32>
    %36 = math.exp %35 : vector<16x128xf32>
    %cst_19 = arith.constant dense<0.000000e+00> : vector<128xf32>
    %37 = vector.multi_reduction <add>, %36, %cst_19 [0] : vector<16x128xf32> to vector<128xf32>
    %38 = vector.shape_cast %37 : vector<128xf32> to vector<1x128xf32>
    %39 = arith.addf %33, %38 : vector<1x128xf32>
    %c0_20 = arith.constant 0 : index
    %c0_21 = arith.constant 0 : index
    %40 = vector.load %arg6[%c0_20, %c0_21] : memref<1x128xf32, #tpu.memory_space<vmem>>, vector<1x128xf32>
    tpu.vector_store %arg6[%c0_20, %c0_21], %39 {strides = array<i32>} : memref<1x128xf32, #tpu.memory_space<vmem>>, vector<1x128xf32>,
    %c0_22 = arith.constant 0 : index
    %c0_23 = arith.constant 0 : index
    %41 = vector.load %arg5[%c0_22, %c0_23] : memref<1x128xf32, #tpu.memory_space<vmem>>, vector<1x128xf32>
    tpu.vector_store %arg5[%c0_22, %c0_23], %28 {strides = array<i32>} : memref<1x128xf32, #tpu.memory_space<vmem>>, vector<1x128xf32>,
    %cst_24 = arith.constant dense<0xFF800000> : vector<128xf32>
    %42 = vector.multi_reduction <maximumf>, %24, %cst_24 [0] : vector<32x128xf32> to vector<128xf32>
    %43 = vector.shape_cast %42 : vector<128xf32> to vector<1x128xf32>
    %c0_25 = arith.constant 0 : index
    %c0_26 = arith.constant 0 : index
    %44 = vector.load %arg7[%c0_25, %c0_26] : memref<1x128xf32, #tpu.memory_space<vmem>>, vector<1x128xf32>
    %45 = arith.maximumf %44, %43 : vector<1x128xf32>
    %c0_27 = arith.constant 0 : index
    %c0_28 = arith.constant 0 : index
    %46 = vector.load %arg7[%c0_27, %c0_28] : memref<1x128xf32, #tpu.memory_space<vmem>>, vector<1x128xf32>
    %47 = arith.subf %46, %45 : vector<1x128xf32>
    %48 = math.exp %47 : vector<1x128xf32>
    %c0_29 = arith.constant 0 : index
    %c0_30 = arith.constant 0 : index
    %49 = vector.load %arg8[%c0_29, %c0_30] : memref<1x128xf32, #tpu.memory_space<vmem>>, vector<1x128xf32>
    %50 = arith.mulf %48, %49 : vector<1x128xf32>
    %51 = vector.broadcast %45 : vector<1x128xf32> to vector<32x128xf32>
    %52 = arith.subf %24, %51 : vector<32x128xf32>
    %53 = math.exp %52 : vector<32x128xf32>
    %cst_31 = arith.constant dense<0.000000e+00> : vector<128xf32>
    %54 = vector.multi_reduction <add>, %53, %cst_31 [0] : vector<32x128xf32> to vector<128xf32>
    %55 = vector.shape_cast %54 : vector<128xf32> to vector<1x128xf32>
    %56 = arith.addf %50, %55 : vector<1x128xf32>
    %c0_32 = arith.constant 0 : index
    %c0_33 = arith.constant 0 : index
    %57 = vector.load %arg8[%c0_32, %c0_33] : memref<1x128xf32, #tpu.memory_space<vmem>>, vector<1x128xf32>
    tpu.vector_store %arg8[%c0_32, %c0_33], %56 {strides = array<i32>} : memref<1x128xf32, #tpu.memory_space<vmem>>, vector<1x128xf32>,
    %c0_34 = arith.constant 0 : index
    %c0_35 = arith.constant 0 : index
    %58 = vector.load %arg7[%c0_34, %c0_35] : memref<1x128xf32, #tpu.memory_space<vmem>>, vector<1x128xf32>
    tpu.vector_store %arg7[%c0_34, %c0_35], %45 {strides = array<i32>} : memref<1x128xf32, #tpu.memory_space<vmem>>, vector<1x128xf32>,
    %c0_i32_36 = arith.constant 0 : i32
    %59 = arith.cmpi eq, %arg1, %c0_i32_36 : i32
    %60 = arith.extui %59 : i1 to i32
    %c0_i32_37 = arith.constant 0 : i32
    %61 = arith.cmpi ne, %60, %c0_i32_37 : i32
    scf.if %61 {
      %c0_38 = arith.constant 0 : index
      %c0_39 = arith.constant 0 : index
      %62 = vector.load %arg5[%c0_38, %c0_39] : memref<1x128xf32, #tpu.memory_space<vmem>>, vector<1x128xf32>
      %c0_40 = arith.constant 0 : index
      %c0_41 = arith.constant 0 : index
      %63 = vector.load %arg7[%c0_40, %c0_41] : memref<1x128xf32, #tpu.memory_space<vmem>>, vector<1x128xf32>
      %64 = arith.addf %62, %63 : vector<1x128xf32>
      %c0_42 = arith.constant 0 : index
      %c0_43 = arith.constant 0 : index
      %65 = vector.load %arg6[%c0_42, %c0_43] : memref<1x128xf32, #tpu.memory_space<vmem>>, vector<1x128xf32>
      %c0_44 = arith.constant 0 : index
      %c0_45 = arith.constant 0 : index
      %66 = vector.load %arg8[%c0_44, %c0_45] : memref<1x128xf32, #tpu.memory_space<vmem>>, vector<1x128xf32>
      %67 = arith.mulf %65, %66 : vector<1x128xf32>
      %68 = math.log %67 : vector<1x128xf32>
      %69 = arith.addf %64, %68 : vector<1x128xf32>
      %cst_46 = arith.constant 0.000000e+00 : f32
      %70 = vector.broadcast %cst_46 : f32 to vector<1x128xf32>
      %71 = arith.maximumf %69, %70 : vector<1x128xf32>
      %72 = math.absf %69 : vector<1x128xf32>
      %cst_47 = arith.constant 0.000000e+00 : f32
      %73 = vector.broadcast %cst_47 : f32 to vector<1x128xf32>
      %74 = arith.subf %73, %72 : vector<1x128xf32>
      %75 = math.exp %74 : vector<1x128xf32>
      %76 = math.log1p %75 : vector<1x128xf32>
      %77 = arith.addf %71, %76 : vector<1x128xf32>
      %c0_48 = arith.constant 0 : index
      %c0_49 = arith.constant 0 : index
      %78 = vector.load %arg4[%c0_48, %c0_49] : memref<1x128xf32, #tpu.memory_space<vmem>>, vector<1x128xf32>
      tpu.vector_store %arg4[%c0_48, %c0_49], %77 {strides = array<i32>} : memref<1x128xf32, #tpu.memory_space<vmem>>, vector<1x128xf32>,
    } else {
    }
    return
  }
  func.func @transform_0(%arg0: i32, %arg1: i32) -> (i32, i32) {
    %c0_i32 = arith.constant 0 : i32
    return %arg1, %arg0 : i32, i32
  }
  func.func @transform_1(%arg0: i32, %arg1: i32) -> (i32, i32) {
    %c0_i32 = arith.constant 0 : i32
    return %arg1, %arg0 : i32, i32
  }
  func.func @transform_2(%arg0: i32, %arg1: i32) -> (i32, i32) {
    %c0_i32 = arith.constant 0 : i32
    %c0_i32_0 = arith.constant 0 : i32
    return %c0_i32, %arg0 : i32, i32
  }
}

</mosaic_0001>

<llo_original>
// kernel: tpu_custom_call.1
$region0: #{tpu_custom_call.1}
  #allocation0 [shape = 'u32[]', space=smem, size = 0x4, offset = 0x4, fixed_abs, tag = 'smem constant byte address 0x4 - core index']
  #allocation1 [shape = 'u32[72,128]{1,0:T(1,128)}', space=vmem, size = 0x9000, scoped, tag = 'internal scratch']
  #allocation2 [shape = 'f32[1,128]{1,0:T(1,128)}', space=vmem, size = 0x200, scoped, tag = 'scratch operand']
  #allocation3 [shape = 'f32[1,128]{1,0:T(1,128)}', space=vmem, size = 0x200, scoped, tag = 'scratch operand']
  #allocation4 [shape = 'f32[1,128]{1,0:T(1,128)}', space=vmem, size = 0x200, scoped, tag = 'scratch operand']
  #allocation5 [shape = 'f32[1,128]{1,0:T(1,128)}', space=vmem, size = 0x200, scoped, tag = 'scratch operand']
  %s0 = inlined_call_operand.hbm [shape: f32[16,128], index: 0, kind: input, shape index: {}]
  %s1 = inlined_call_operand.hbm [shape: f32[32,128], index: 1, kind: input, shape index: {}]
  %s2 = inlined_call_operand.hbm [shape: f32[1,128], index: 2, kind: output, shape index: {}]
  %s3 = sld [smem:[#allocation0]]
  $region34: #{tpu_custom_call.1} parent=0
    _
  %s5 = ssub.s32 1, %s3
  %s6 = scalar_select 0, %s5, %s3
  $region1: #{tpu_custom_call.1} parent=0
    #allocation6 [shape = 'u8[8192]{0}', space=vmem, size = 0x2000, scoped, tag = 'input window, operand 0, single buffered']
    #allocation7 [shape = 's32[1]{0}', space=sflag, size = 0x4, scoped, tag = 'scoped memory for tpu_custom_call.1']
    #allocation8 [shape = 's32[1]{0}', space=sflag, size = 0x4, scoped, tag = 'scoped memory for tpu_custom_call.1']
    #allocation9 [shape = 'u8[16384]{0}', space=vmem, size = 0x4000, scoped, tag = 'input window, operand 1, single buffered']
    #allocation10 [shape = 's32[1]{0}', space=sflag, size = 0x4, scoped, tag = 'scoped memory for tpu_custom_call.1']
    #allocation11 [shape = 'u8[512]{0}', space=vmem, size = 0x400, scoped, tag = 'output window, operand 0, single buffered']
    %7 = vsyncpa [#allocation7], 0
    %8 = vsyncpa [#allocation10], 0
    %9 = vsyncpa [#allocation8], 0
    // Predicated region
    $region2: #{tpu_custom_call.1} parent=1 // pred_check
      _
    $region3: #{tpu_custom_call.1} parent=1 // pred_check_branch
      %11 = sbr.rel (0) target = $region5
    $region4: #{tpu_custom_call.1} parent=1 // pred_region
      %13 = vsyncadd [#allocation7], 0
      %s14 = sshll.u32 %s0, 4
      %s15 = int_to_ptr.hbm [resolvable:$true] %s14
      %s16 = sshll.u32 [#allocation6], 4
      %s17 = int_to_ptr.vmem [resolvable:$true] %s16
      %22 = dma.hbm_to_vmem [thread:$0]  %s15, 256, %s17, [#allocation7], 128, 128, 8
    $region5: #{tpu_custom_call.1} parent=1 // pred_fallthru
      _
    // Predicated region
    $region6: #{tpu_custom_call.1} parent=1 // pred_check
      _
    $region7: #{tpu_custom_call.1} parent=1 // pred_check_branch
      %24 = sbr.rel (0) target = $region9
    $region8: #{tpu_custom_call.1} parent=1 // pred_region
      %26 = vsyncadd [#allocation10], 0
      %s27 = sshll.u32 %s1, 4
      %s28 = int_to_ptr.hbm [resolvable:$true] %s27
      %s29 = sshll.u32 [#allocation9], 4
      %s30 = int_to_ptr.vmem [resolvable:$true] %s29
      %35 = dma.hbm_to_vmem [thread:$0]  %s28, 512, %s30, [#allocation10], 128, 128, 8
    $region9: #{tpu_custom_call.1} parent=1 // pred_fallthru
      _
    // Predicated region
    $region10: #{tpu_custom_call.1} parent=1 // pred_check
      _
    $region11: #{tpu_custom_call.1} parent=1 // pred_check_branch
      %37 = sbr.rel (0) target = $region13
    $region12: #{tpu_custom_call.1} parent=1 // pred_region
      %39 = dma.done [#allocation7], 256
    $region13: #{tpu_custom_call.1} parent=1 // pred_fallthru
      _
    // Predicated region
    $region14: #{tpu_custom_call.1} parent=1 // pred_check
      _
    $region15: #{tpu_custom_call.1} parent=1 // pred_check_branch
      %41 = sbr.rel (0) target = $region17
    $region16: #{tpu_custom_call.1} parent=1 // pred_region
      %43 = dma.done [#allocation10], 512
    $region17: #{tpu_custom_call.1} parent=1 // pred_fallthru
      _
    %p44 = scmp.eq.s32.totalorder 0, 0
    // Predicated region
    $region18: #{tpu_custom_call.1} parent=1 // pred_check
      %p45 = pneg %p44
    $region19: #{tpu_custom_call.1} parent=1 // pred_check_branch
      %47 = sbr.rel (%p45) target = $region21
    $region20: #{tpu_custom_call.1} parent=1 // pred_region
      %48 = vst [vmem:[#allocation2] sm:$0x1] -1e+30
      %49 = vst [vmem:[#allocation3] sm:$0x1] 0.0
      %50 = vst [vmem:[#allocation4] sm:$0x1] -1e+30
      %51 = vst [vmem:[#allocation5] sm:$0x1] 0.0
    $region21: #{tpu_custom_call.1} parent=1 // pred_fallthru
      _
    %v52 = vld [vmem:[#allocation6] sm:$0xff]
    %v53 = vld [vmem:[#allocation6 + $0x8] sm:$0xff]
    %v54 = vld [vmem:[#allocation9] sm:$0xff]
    %v55 = vld [vmem:[#allocation9 + $0x8] sm:$0xff]
    %v56 = vld [vmem:[#allocation9 + $0x10] sm:$0xff]
    %v57 = vld [vmem:[#allocation9 + $0x18] sm:$0xff]
    %v58 = vsub.f32 0.0, %v52
    %v59 = vsub.f32 0.0, %v53
    %v60 = vadd.f32 %v58, 1.1
    %v61 = vadd.f32 %v59, 1.1
    %v62 = vmax.f32 %v60, 0.0
    %v63 = vmax.f32 %v61, 0.0
    %v64 = vadd.f32 %v54, 0.1
    %v65 = vadd.f32 %v55, 0.1
    %v66 = vadd.f32 %v56, 0.1
    %v67 = vadd.f32 %v57, 0.1
    %v68 = vmax.f32 %v64, 0.0
    %v69 = vmax.f32 %v65, 0.0
    %v70 = vmax.f32 %v66, 0.0
    %v71 = vmax.f32 %v67, 0.0
    %v72 = vmul.f32 %v62, -1.0
    %v73 = vmul.f32 %v63, -1.0
    %v74 = vsub.f32 %v52, 0.9
    %v75 = vsub.f32 %v53, 0.9
    %v76 = vmul.f32 %v72, %v74
    %v77 = vmul.f32 %v73, %v75
    %v78 = vsub.f32 %v54, 0.1
    %v79 = vsub.f32 %v55, 0.1
    %v80 = vsub.f32 %v56, 0.1
    %v81 = vsub.f32 %v57, 0.1
    %v82 = vmul.f32 %v68, %v78
    %v83 = vmul.f32 %v69, %v79
    %v84 = vmul.f32 %v70, %v80
    %v85 = vmul.f32 %v71, %v81
    %v86 = vmax.f32 %v76, %v77
    %v87 = vrot.slane %v86, 4
    %v88 = vmax.f32 %v86, %v87
    %v89 = vrot.slane %v88, 2
    %v90 = vmax.f32 %v88, %v89
    %v91 = vrot.slane %v90, 1
    %v92 = vmax.f32 %v90, %v91
    %v93 = vld [vmem:[#allocation2] sm:$0x1]
    %v94 = vmax.f32 %v93, %v92
    %v95 = vsub.f32 %v93, %v94
    %v96 = vmul.f32 %v95, 1.442695
    %v97 = vpow.pop %v96
    %v98 = vld [vmem:[#allocation3] sm:$0x1]
    %v99 = vmul.f32 %v97, %v98
    %v101 = vperm.slane %v94, 0
    %v103 = vsub.f32 %v76, %v101
    %v104 = vsub.f32 %v77, %v101
    %v105 = vmul.f32 %v103, 1.442695
    %v106 = vpow.pop %v105
    %v107 = vmul.f32 %v104, 1.442695
    %v108 = vpow.pop %v107
    %v109 = vadd.f32 %v106, %v108
    %v110 = vrot.slane %v109, 4
    %v111 = vadd.f32 %v109, %v110
    %v112 = vrot.slane %v111, 2
    %v113 = vadd.f32 %v111, %v112
    %v114 = vrot.slane %v113, 1
    %v115 = vadd.f32 %v113, %v114
    %v116 = vadd.f32 %v99, %v115
    %117 = vst [vmem:[#allocation3] sm:$0x1] %v116
    %118 = vst [vmem:[#allocation2] sm:$0x1] %v94
    %v119 = vmax.f32 %v82, %v83
    %v120 = vmax.f32 %v84, %v85
    %v121 = vmax.f32 %v119, %v120
    %v122 = vrot.slane %v121, 4
    %v123 = vmax.f32 %v121, %v122
    %v124 = vrot.slane %v123, 2
    %v125 = vmax.f32 %v123, %v124
    %v126 = vrot.slane %v125, 1
    %v127 = vmax.f32 %v125, %v126
    %v128 = vld [vmem:[#allocation4] sm:$0x1]
    %v129 = vmax.f32 %v128, %v127
    %v130 = vsub.f32 %v128, %v129
    %v131 = vmul.f32 %v130, 1.442695
    %v132 = vpow.pop %v131
    %v133 = vld [vmem:[#allocation5] sm:$0x1]
    %v134 = vmul.f32 %v132, %v133
    %v136 = vperm.slane %v129, 0
    %v138 = vsub.f32 %v82, %v136
    %v139 = vsub.f32 %v83, %v136
    %v140 = vsub.f32 %v84, %v136
    %v141 = vsub.f32 %v85, %v136
    %v142 = vmul.f32 %v138, 1.442695
    %v143 = vpow.pop %v142
    %v144 = vmul.f32 %v139, 1.442695
    %v145 = vpow.pop %v144
    %v146 = vmul.f32 %v140, 1.442695
    %v147 = vpow.pop %v146
    %v148 = vmul.f32 %v141, 1.442695
    %v149 = vpow.pop %v148
    %v150 = vadd.f32 %v143, %v145
    %v151 = vadd.f32 %v150, %v147
    %v152 = vadd.f32 %v151, %v149
    %v153 = vrot.slane %v152, 4
    %v154 = vadd.f32 %v152, %v153
    %v155 = vrot.slane %v154, 2
    %v156 = vadd.f32 %v154, %v155
    %v157 = vrot.slane %v156, 1
    %v158 = vadd.f32 %v156, %v157
    %v159 = vadd.f32 %v134, %v158
    %160 = vst [vmem:[#allocation5] sm:$0x1] %v159
    %161 = vst [vmem:[#allocation4] sm:$0x1] %v129
    // Predicated region
    $region22: #{tpu_custom_call.1} parent=1 // pred_check
      %p162 = pneg %p44
    $region23: #{tpu_custom_call.1} parent=1 // pred_check_branch
      %164 = sbr.rel (%p162) target = $region25
    $region24: #{tpu_custom_call.1} parent=1 // pred_region
      %v165 = vld [vmem:[#allocation2] sm:$0x1]
      %v166 = vld [vmem:[#allocation4] sm:$0x1]
      %v167 = vadd.f32 %v165, %v166
      %v168 = vld [vmem:[#allocation3] sm:$0x1]
      %v169 = vld [vmem:[#allocation5] sm:$0x1]
      %v170 = vmul.f32 %v168, %v169
      %v171 = vlog2.pop %v170
      %v172 = vmul.f32 %v171, 0.6931472
      %v173 = vadd.f32 %v167, %v172
      %v174 = vmax.f32 %v173, 0.0
      %v175 = vand.u32 2147483647, %v173
      %v176 = vsub.f32 0.0, %v175
      %v177 = vmul.f32 %v176, 1.442695
      %v178 = vpow.pop %v177
      %v179 = vadd.f32 %v178, 1.0
      %v180 = vlog2.pop %v179
      %v181 = vmul.f32 %v180, 0.6931472
      %v182 = vmul.f32 -0.5, %v178
      %v183 = vadd.f32 %v182, 1.0
      %v184 = vmul.f32 %v183, %v178
      %v185 = vand.u32 2147483647, %v178
      %vm186 = vcmp.lt.f32.partialorder %v185, 0.0004427343
      %v187 = vsel %vm186, %v184, %v181
      %v188 = vadd.f32 %v174, %v187
      %189 = vst [vmem:[#allocation11] sm:$0x1] %v188
    $region25: #{tpu_custom_call.1} parent=1 // pred_fallthru
      _
    // Predicated region
    $region26: #{tpu_custom_call.1} parent=1 // pred_check
      _
    $region27: #{tpu_custom_call.1} parent=1 // pred_check_branch
      %191 = sbr.rel (0) target = $region29
    $region28: #{tpu_custom_call.1} parent=1 // pred_region
      %193 = vsyncadd [#allocation8], 0
      %s195 = sshll.u32 [#allocation11], 4
      %s196 = int_to_ptr.vmem [resolvable:$true] %s195
      %s197 = sshll.u32 %s2, 4
      %s198 = int_to_ptr.hbm [resolvable:$true] %s197
      %200 = dma.vmem_to_hbm [thread:$0]  %s196, 16, %s198, [#allocation8]
    $region29: #{tpu_custom_call.1} parent=1 // pred_fallthru
      _
    // Predicated region
    $region30: #{tpu_custom_call.1} parent=1 // pred_check
      _
    $region31: #{tpu_custom_call.1} parent=1 // pred_check_branch
      %202 = sbr.rel (0) target = $region33
    $region32: #{tpu_custom_call.1} parent=1 // pred_region
      %204 = dma.done [#allocation8], 16
    $region33: #{tpu_custom_call.1} parent=1 // pred_fallthru
      _
    %205 = vsyncpa [#allocation7], 1
    %206 = vsyncpa [#allocation10], 1
    %207 = vsyncpa [#allocation8], 1

</llo_original>
